<compile_context>
chip_gen: v5e
topology: v5e:2x2
jax: 0.10.0
libtpu: 0.0.40
codegen_flags: <defaults>
</compile_context>

<pallas_src>
import jax
import jax.numpy as jnp
from jax.experimental import pallas as pl
from jax.experimental.pallas import tpu as pltpu  # noqa: F401  (kept for TPU-specific params if needed)


def _make_mha_kernel(n_head, d_k, d_v, sz_b, len_q, len_k, len_v,
                     temperature, ln_eps=1e-5):
    inv_temp = 1.0 / float(temperature)

    def kernel(q_ref, k_ref, v_ref, wq_ref, wk_ref, wv_ref, wfc_ref,
               bfc_ref, gamma_ref, beta_ref, o_ref):
        # Flattened (rows, d_model) activation slabs; residual kept in f32.
        q2 = q_ref[...]                                   # (B*Lq, D)
        k2 = k_ref[...]                                   # (B*Lk, D)
        v2 = v_ref[...]                                   # (B*Lv, D)
        residual = q2.astype(jnp.float32)

        # ---- QKV projections: single lane-dense 2-D MXU matmuls (bf16 in, f32 acc).
        Qall = jnp.dot(q2.astype(jnp.bfloat16), wq_ref[...],
                       preferred_element_type=jnp.float32)        # (B*Lq, H*dk)
        Kall = jnp.dot(k2.astype(jnp.bfloat16), wk_ref[...],
                       preferred_element_type=jnp.float32)        # (B*Lk, H*dk)
        Vall = jnp.dot(v2.astype(jnp.bfloat16), wv_ref[...],
                       preferred_element_type=jnp.float32)        # (B*Lv, H*dv)

        # Re-introduce the batch dim (leading-dim split only; lane layout unchanged).
        Q3 = Qall.reshape(sz_b, len_q, n_head * d_k).astype(jnp.bfloat16)
        K3 = Kall.reshape(sz_b, len_k, n_head * d_k).astype(jnp.bfloat16)
        V3 = Vall.reshape(sz_b, len_v, n_head * d_v).astype(jnp.bfloat16)

        # ---- Scaled dot-product attention, per head (static unroll, batched over B).
        head_outs = []
        for h in range(n_head):
            Qh = Q3[:, :, h * d_k:(h + 1) * d_k]          # static lane slice (B,Lq,dk)
            Kh = K3[:, :, h * d_k:(h + 1) * d_k]          # (B,Lk,dk)
            Vh = V3[:, :, h * d_v:(h + 1) * d_v]          # (B,Lv,dv)

            s = jnp.einsum('bqd,bkd->bqk', Qh, Kh,
                           preferred_element_type=jnp.float32) * inv_temp
            m = jnp.max(s, axis=-1, keepdims=True)
            e = jnp.exp(s - m)                            # un-normalized weights (f32)
            denom = jnp.sum(e, axis=-1, keepdims=True)    # (B,Lq,1)

            o_un = jnp.einsum('bqk,bkd->bqd', e.astype(jnp.bfloat16), Vh,
                              preferred_element_type=jnp.float32)
            # Deferred softmax normalization via EUP approx reciprocal (free slot).
            head_outs.append(o_un * pl.reciprocal(denom, approx=True))

        # Head-major concat matches PyTorch permute(1,2,0,3).view(b, lq, h*dv).
        O = jnp.concatenate(head_outs, axis=-1)           # (B, Lq, H*dv) f32
        O2 = O.reshape(sz_b * len_q, n_head * d_v).astype(jnp.bfloat16)

        # ---- fc with the head-merge folded into the contraction dim, + bias + residual.
        out = jnp.dot(O2, wfc_ref[...], preferred_element_type=jnp.float32)
        out = out + bfc_ref[...] + residual               # (B*Lq, D) f32

        # ---- LayerNorm (f32, eps=1e-5, population variance) -- matches PyTorch.
        mu = jnp.mean(out, axis=-1, keepdims=True)
        var = jnp.mean(jnp.square(out - mu), axis=-1, keepdims=True)
        out = (out - mu) * jax.lax.rsqrt(var + ln_eps)
        o_ref[...] = (out * gamma_ref[...] + beta_ref[...]).astype(o_ref.dtype)

    return kernel


def prepare_params(params, n_head, d_k, d_v):
    """One-time (hoisted) conversion from PyTorch weight layout to kernel layout.

    Projection / fc weights are stored transposed and in bf16 so the kernel does
    plain 2-D bf16 matmuls with no in-kernel weight reshapes or casts.
    """
    d_model = params["w_qs"].shape[1]
    return {
        "wq": params["w_qs"].T.astype(jnp.bfloat16),      # (d_model, n_head*d_k)
        "wk": params["w_ks"].T.astype(jnp.bfloat16),      # (d_model, n_head*d_k)
        "wv": params["w_vs"].T.astype(jnp.bfloat16),      # (d_model, n_head*d_v)
        "wfc": params["w_fc"].T.astype(jnp.bfloat16),     # (n_head*d_v, d_model)
        "bfc": params["b_fc"].reshape(1, d_model).astype(jnp.float32),
        "gamma": params["gamma"].reshape(1, d_model).astype(jnp.float32),
        "beta": params["beta"].reshape(1, d_model).astype(jnp.float32),
    }


def multi_head_attention(q, k, v, kparams, *, n_head, d_k, d_v):
    sz_b, len_q, d_model = q.shape
    len_k = k.shape[1]
    len_v = v.shape[1]
    temperature = float(d_k) ** 0.5

    kernel = _make_mha_kernel(n_head, d_k, d_v, sz_b, len_q, len_k, len_v,
                              temperature)

    # Fold batch into rows: lane-dense 2-D slabs, single program, VMEM resident.
    q2 = q.reshape(sz_b * len_q, d_model)
    k2 = k.reshape(sz_b * len_k, d_model)
    v2 = v.reshape(sz_b * len_v, d_model)

    out2 = pl.pallas_call(
        kernel,
        out_shape=jax.ShapeDtypeStruct((sz_b * len_q, d_model), q.dtype),
    )(q2, k2, v2,
      kparams["wq"], kparams["wk"], kparams["wv"], kparams["wfc"],
      kparams["bfc"], kparams["gamma"], kparams["beta"])

    return out2.reshape(sz_b, len_q, d_model)


def init_params(key, n_head, d_model, d_k, d_v):
    """PyTorch-style init, PyTorch weight layouts (out_features, in_features)."""
    ks = jax.random.split(key, 7)
    std_qk = (2.0 / (d_model + d_k)) ** 0.5
    std_v = (2.0 / (d_model + d_v)) ** 0.5
    std_fc = (2.0 / (n_head * d_v + d_model)) ** 0.5          # xavier_normal
    lim_b = 1.0 / (n_head * d_v) ** 0.5
    return {
        "w_qs": std_qk * jax.random.normal(ks[0], (n_head * d_k, d_model), jnp.float32),
        "w_ks": std_qk * jax.random.normal(ks[1], (n_head * d_k, d_model), jnp.float32),
        "w_vs": std_v * jax.random.normal(ks[2], (n_head * d_v, d_model), jnp.float32),
        "w_fc": std_fc * jax.random.normal(ks[3], (d_model, n_head * d_v), jnp.float32),
        "b_fc": jax.random.uniform(ks[4], (d_model,), jnp.float32, -lim_b, lim_b),
        "gamma": 1.0 + 0.05 * jax.random.normal(ks[5], (d_model,), jnp.float32),
        "beta": 0.05 * jax.random.normal(ks[6], (d_model,), jnp.float32),
    }


def reference(q, k, v, params, n_head, d_k, d_v):
    """Pure-JAX (f32) mirror of the PyTorch forward (eval mode: dropouts identity)."""
    sz_b, len_q, d_model = q.shape
    len_k, len_v = k.shape[1], v.shape[1]
    residual = q
    temperature = float(d_k) ** 0.5

    qp = (q @ params["w_qs"].T).reshape(sz_b, len_q, n_head, d_k)
    kp = (k @ params["w_ks"].T).reshape(sz_b, len_k, n_head, d_k)
    vp = (v @ params["w_vs"].T).reshape(sz_b, len_v, n_head, d_v)
    qp = qp.transpose(2, 0, 1, 3).reshape(-1, len_q, d_k)
    kp = kp.transpose(2, 0, 1, 3).reshape(-1, len_k, d_k)
    vp = vp.transpose(2, 0, 1, 3).reshape(-1, len_v, d_v)

    attn = jnp.einsum("bqd,bkd->bqk", qp, kp) / temperature
    attn = jax.nn.softmax(attn, axis=2)
    out = jnp.einsum("bqk,bkd->bqd", attn, vp)

    out = out.reshape(n_head, sz_b, len_q, d_v).transpose(1, 2, 0, 3)
    out = out.reshape(sz_b, len_q, n_head * d_v)
    out = out @ params["w_fc"].T + params["b_fc"]
    out = out + residual
    mu = out.mean(-1, keepdims=True)
    var = ((out - mu) ** 2).mean(-1, keepdims=True)
    return (out - mu) / jnp.sqrt(var + 1e-5) * params["gamma"] + params["beta"]


if __name__ == "__main__":
    sz_b, seq_len = 2, 8
    d_model = 32
    n_head, d_k, d_v = 4, 16, 16

    key = jax.random.PRNGKey(0)
    kq, kk, kv, kp = jax.random.split(key, 4)
    q = jax.random.normal(kq, (sz_b, seq_len, d_model), jnp.float32)
    k = jax.random.normal(kk, (sz_b, seq_len, d_model), jnp.float32)
    v = jax.random.normal(kv, (sz_b, seq_len, d_model), jnp.float32)

    params = init_params(kp, n_head, d_model, d_k, d_v)
    kparams = prepare_params(params, n_head, d_k, d_v)   # hoisted: done once, not per call

    out = multi_head_attention(q, k, v, kparams, n_head=n_head, d_k=d_k, d_v=d_v)
    out = jax.block_until_ready(out)

    ref = reference(q, k, v, params, n_head, d_k, d_v)
    assert out.shape == (sz_b, seq_len, d_model), out.shape
    # bf16 MXU operands (f32 accumulation) + approx reciprocal => loosened tolerance
    # vs the pure-f32 reference.
    max_err = float(jnp.max(jnp.abs(out - ref)))
    assert max_err < 1e-1, f"max_err={max_err}"
    print("KERNEL_OK")
</pallas_src>

<mosaic_0001>
module attributes {stable_mosaic.version = 11 : i64} {
  func.func @kernel(%arg0: memref<16x32xf32, #tpu.memory_space<vmem>>, %arg1: memref<16x32xf32, #tpu.memory_space<vmem>>, %arg2: memref<16x32xf32, #tpu.memory_space<vmem>>, %arg3: memref<32x64xbf16, #tpu.memory_space<vmem>>, %arg4: memref<32x64xbf16, #tpu.memory_space<vmem>>, %arg5: memref<32x64xbf16, #tpu.memory_space<vmem>>, %arg6: memref<64x32xbf16, #tpu.memory_space<vmem>>, %arg7: memref<1x32xf32, #tpu.memory_space<vmem>>, %arg8: memref<1x32xf32, #tpu.memory_space<vmem>>, %arg9: memref<1x32xf32, #tpu.memory_space<vmem>>, %arg10: memref<16x32xf32, #tpu.memory_space<vmem>>) attributes {dimension_semantics = [], scalar_prefetch = 0 : i64, scratch_operands = 0 : i64, tpu.core_type = #tpu.core_type<tc>} {
    %c0 = arith.constant 0 : index
    %c0_0 = arith.constant 0 : index
    %0 = vector.load %arg0[%c0, %c0_0] : memref<16x32xf32, #tpu.memory_space<vmem>>, vector<16x32xf32>
    %c0_1 = arith.constant 0 : index
    %c0_2 = arith.constant 0 : index
    %1 = vector.load %arg1[%c0_1, %c0_2] : memref<16x32xf32, #tpu.memory_space<vmem>>, vector<16x32xf32>
    %c0_3 = arith.constant 0 : index
    %c0_4 = arith.constant 0 : index
    %2 = vector.load %arg2[%c0_3, %c0_4] : memref<16x32xf32, #tpu.memory_space<vmem>>, vector<16x32xf32>
    %3 = arith.truncf %0 : vector<16x32xf32> to vector<16x32xbf16>
    %c0_5 = arith.constant 0 : index
    %c0_6 = arith.constant 0 : index
    %4 = vector.load %arg3[%c0_5, %c0_6] : memref<32x64xbf16, #tpu.memory_space<vmem>>, vector<32x64xbf16>
    %cst = arith.constant dense<0.000000e+00> : vector<16x64xf32>
    %5 = tpu.matmul %3, %4, %cst {dimension_numbers = #tpu.dot_dimension_numbers<[1], [0], [0], [1], [0, 0, 1, 1], [], []>} : vector<16x32xbf16>, vector<32x64xbf16>, vector<16x64xf32> -> vector<16x64xf32>
    %6 = arith.truncf %1 : vector<16x32xf32> to vector<16x32xbf16>
    %c0_7 = arith.constant 0 : index
    %c0_8 = arith.constant 0 : index
    %7 = vector.load %arg4[%c0_7, %c0_8] : memref<32x64xbf16, #tpu.memory_space<vmem>>, vector<32x64xbf16>
    %cst_9 = arith.constant dense<0.000000e+00> : vector<16x64xf32>
    %8 = tpu.matmul %6, %7, %cst_9 {dimension_numbers = #tpu.dot_dimension_numbers<[1], [0], [0], [1], [0, 0, 1, 1], [], []>} : vector<16x32xbf16>, vector<32x64xbf16>, vector<16x64xf32> -> vector<16x64xf32>
    %9 = arith.truncf %2 : vector<16x32xf32> to vector<16x32xbf16>
    %c0_10 = arith.constant 0 : index
    %c0_11 = arith.constant 0 : index
    %10 = vector.load %arg5[%c0_10, %c0_11] : memref<32x64xbf16, #tpu.memory_space<vmem>>, vector<32x64xbf16>
    %cst_12 = arith.constant dense<0.000000e+00> : vector<16x64xf32>
    %11 = tpu.matmul %9, %10, %cst_12 {dimension_numbers = #tpu.dot_dimension_numbers<[1], [0], [0], [1], [0, 0, 1, 1], [], []>} : vector<16x32xbf16>, vector<32x64xbf16>, vector<16x64xf32> -> vector<16x64xf32>
    %12 = vector.shape_cast %5 : vector<16x64xf32> to vector<2x8x64xf32>
    %13 = arith.truncf %12 : vector<2x8x64xf32> to vector<2x8x64xbf16>
    %14 = vector.shape_cast %8 : vector<16x64xf32> to vector<2x8x64xf32>
    %15 = arith.truncf %14 : vector<2x8x64xf32> to vector<2x8x64xbf16>
    %16 = vector.shape_cast %11 : vector<16x64xf32> to vector<2x8x64xf32>
    %17 = arith.truncf %16 : vector<2x8x64xf32> to vector<2x8x64xbf16>
    %18 = vector.extract_strided_slice %13 {offsets = [0, 0, 0], sizes = [2, 8, 16], strides = [1, 1, 1]} : vector<2x8x64xbf16> to vector<2x8x16xbf16>
    %19 = vector.extract_strided_slice %15 {offsets = [0, 0, 0], sizes = [2, 8, 16], strides = [1, 1, 1]} : vector<2x8x64xbf16> to vector<2x8x16xbf16>
    %20 = vector.extract_strided_slice %17 {offsets = [0, 0, 0], sizes = [2, 8, 16], strides = [1, 1, 1]} : vector<2x8x64xbf16> to vector<2x8x16xbf16>
    "tpu.trace_start"() <{level = 10 : i32, message = "bqd,bkd->bqk"}> : () -> ()
    %cst_13 = arith.constant dense<0.000000e+00> : vector<2x8x8xf32>
    %21 = tpu.matmul %18, %19, %cst_13 {dimension_numbers = #tpu.dot_dimension_numbers<[2], [2], [1], [1], [0, 0, 0, 1, 1, 1], [0], [0]>} : vector<2x8x16xbf16>, vector<2x8x16xbf16>, vector<2x8x8xf32> -> vector<2x8x8xf32>
    "tpu.trace_stop"() : () -> ()
    %cst_14 = arith.constant 2.500000e-01 : f32
    %22 = vector.broadcast %cst_14 : f32 to vector<2x8x8xf32>
    %23 = arith.mulf %21, %22 : vector<2x8x8xf32>
    %cst_15 = arith.constant dense<0xFF800000> : vector<2x8xf32>
    %24 = vector.multi_reduction <maximumf>, %23, %cst_15 [2] : vector<2x8x8xf32> to vector<2x8xf32>
    %25 = vector.shape_cast %24 : vector<2x8xf32> to vector<2x8x1xf32>
    %26 = vector.broadcast %25 : vector<2x8x1xf32> to vector<2x8x8xf32>
    %27 = arith.subf %23, %26 : vector<2x8x8xf32>
    %28 = math.exp %27 : vector<2x8x8xf32>
    %cst_16 = arith.constant dense<0.000000e+00> : vector<2x8xf32>
    %29 = vector.multi_reduction <add>, %28, %cst_16 [2] : vector<2x8x8xf32> to vector<2x8xf32>
    %30 = vector.shape_cast %29 : vector<2x8xf32> to vector<2x8x1xf32>
    %31 = arith.truncf %28 : vector<2x8x8xf32> to vector<2x8x8xbf16>
    "tpu.trace_start"() <{level = 10 : i32, message = "bqk,bkd->bqd"}> : () -> ()
    %cst_17 = arith.constant dense<0.000000e+00> : vector<2x8x16xf32>
    %32 = tpu.matmul %31, %20, %cst_17 {dimension_numbers = #tpu.dot_dimension_numbers<[2], [1], [1], [2], [0, 0, 0, 1, 1, 2], [0], [0]>} : vector<2x8x8xbf16>, vector<2x8x16xbf16>, vector<2x8x16xf32> -> vector<2x8x16xf32>
    "tpu.trace_stop"() : () -> ()
    %33 = tpu.reciprocal %30 {approx = true} : vector<2x8x1xf32> -> vector<2x8x1xf32>
    %34 = vector.broadcast %33 : vector<2x8x1xf32> to vector<2x8x16xf32>
    %35 = arith.mulf %32, %34 : vector<2x8x16xf32>
    %36 = vector.extract_strided_slice %13 {offsets = [0, 0, 16], sizes = [2, 8, 16], strides = [1, 1, 1]} : vector<2x8x64xbf16> to vector<2x8x16xbf16>
    %37 = vector.extract_strided_slice %15 {offsets = [0, 0, 16], sizes = [2, 8, 16], strides = [1, 1, 1]} : vector<2x8x64xbf16> to vector<2x8x16xbf16>
    %38 = vector.extract_strided_slice %17 {offsets = [0, 0, 16], sizes = [2, 8, 16], strides = [1, 1, 1]} : vector<2x8x64xbf16> to vector<2x8x16xbf16>
    "tpu.trace_start"() <{level = 10 : i32, message = "bqd,bkd->bqk"}> : () -> ()
    %cst_18 = arith.constant dense<0.000000e+00> : vector<2x8x8xf32>
    %39 = tpu.matmul %36, %37, %cst_18 {dimension_numbers = #tpu.dot_dimension_numbers<[2], [2], [1], [1], [0, 0, 0, 1, 1, 1], [0], [0]>} : vector<2x8x16xbf16>, vector<2x8x16xbf16>, vector<2x8x8xf32> -> vector<2x8x8xf32>
    "tpu.trace_stop"() : () -> ()
    %cst_19 = arith.constant 2.500000e-01 : f32
    %40 = vector.broadcast %cst_19 : f32 to vector<2x8x8xf32>
    %41 = arith.mulf %39, %40 : vector<2x8x8xf32>
    %cst_20 = arith.constant dense<0xFF800000> : vector<2x8xf32>
    %42 = vector.multi_reduction <maximumf>, %41, %cst_20 [2] : vector<2x8x8xf32> to vector<2x8xf32>
    %43 = vector.shape_cast %42 : vector<2x8xf32> to vector<2x8x1xf32>
    %44 = vector.broadcast %43 : vector<2x8x1xf32> to vector<2x8x8xf32>
    %45 = arith.subf %41, %44 : vector<2x8x8xf32>
    %46 = math.exp %45 : vector<2x8x8xf32>
    %cst_21 = arith.constant dense<0.000000e+00> : vector<2x8xf32>
    %47 = vector.multi_reduction <add>, %46, %cst_21 [2] : vector<2x8x8xf32> to vector<2x8xf32>
    %48 = vector.shape_cast %47 : vector<2x8xf32> to vector<2x8x1xf32>
    %49 = arith.truncf %46 : vector<2x8x8xf32> to vector<2x8x8xbf16>
    "tpu.trace_start"() <{level = 10 : i32, message = "bqk,bkd->bqd"}> : () -> ()
    %cst_22 = arith.constant dense<0.000000e+00> : vector<2x8x16xf32>
    %50 = tpu.matmul %49, %38, %cst_22 {dimension_numbers = #tpu.dot_dimension_numbers<[2], [1], [1], [2], [0, 0, 0, 1, 1, 2], [0], [0]>} : vector<2x8x8xbf16>, vector<2x8x16xbf16>, vector<2x8x16xf32> -> vector<2x8x16xf32>
    "tpu.trace_stop"() : () -> ()
    %51 = tpu.reciprocal %48 {approx = true} : vector<2x8x1xf32> -> vector<2x8x1xf32>
    %52 = vector.broadcast %51 : vector<2x8x1xf32> to vector<2x8x16xf32>
    %53 = arith.mulf %50, %52 : vector<2x8x16xf32>
    %54 = vector.extract_strided_slice %13 {offsets = [0, 0, 32], sizes = [2, 8, 16], strides = [1, 1, 1]} : vector<2x8x64xbf16> to vector<2x8x16xbf16>
    %55 = vector.extract_strided_slice %15 {offsets = [0, 0, 32], sizes = [2, 8, 16], strides = [1, 1, 1]} : vector<2x8x64xbf16> to vector<2x8x16xbf16>
    %56 = vector.extract_strided_slice %17 {offsets = [0, 0, 32], sizes = [2, 8, 16], strides = [1, 1, 1]} : vector<2x8x64xbf16> to vector<2x8x16xbf16>
    "tpu.trace_start"() <{level = 10 : i32, message = "bqd,bkd->bqk"}> : () -> ()
    %cst_23 = arith.constant dense<0.000000e+00> : vector<2x8x8xf32>
    %57 = tpu.matmul %54, %55, %cst_23 {dimension_numbers = #tpu.dot_dimension_numbers<[2], [2], [1], [1], [0, 0, 0, 1, 1, 1], [0], [0]>} : vector<2x8x16xbf16>, vector<2x8x16xbf16>, vector<2x8x8xf32> -> vector<2x8x8xf32>
    "tpu.trace_stop"() : () -> ()
    %cst_24 = arith.constant 2.500000e-01 : f32
    %58 = vector.broadcast %cst_24 : f32 to vector<2x8x8xf32>
    %59 = arith.mulf %57, %58 : vector<2x8x8xf32>
    %cst_25 = arith.constant dense<0xFF800000> : vector<2x8xf32>
    %60 = vector.multi_reduction <maximumf>, %59, %cst_25 [2] : vector<2x8x8xf32> to vector<2x8xf32>
    %61 = vector.shape_cast %60 : vector<2x8xf32> to vector<2x8x1xf32>
    %62 = vector.broadcast %61 : vector<2x8x1xf32> to vector<2x8x8xf32>
    %63 = arith.subf %59, %62 : vector<2x8x8xf32>
    %64 = math.exp %63 : vector<2x8x8xf32>
    %cst_26 = arith.constant dense<0.000000e+00> : vector<2x8xf32>
    %65 = vector.multi_reduction <add>, %64, %cst_26 [2] : vector<2x8x8xf32> to vector<2x8xf32>
    %66 = vector.shape_cast %65 : vector<2x8xf32> to vector<2x8x1xf32>
    %67 = arith.truncf %64 : vector<2x8x8xf32> to vector<2x8x8xbf16>
    "tpu.trace_start"() <{level = 10 : i32, message = "bqk,bkd->bqd"}> : () -> ()
    %cst_27 = arith.constant dense<0.000000e+00> : vector<2x8x16xf32>
    %68 = tpu.matmul %67, %56, %cst_27 {dimension_numbers = #tpu.dot_dimension_numbers<[2], [1], [1], [2], [0, 0, 0, 1, 1, 2], [0], [0]>} : vector<2x8x8xbf16>, vector<2x8x16xbf16>, vector<2x8x16xf32> -> vector<2x8x16xf32>
    "tpu.trace_stop"() : () -> ()
    %69 = tpu.reciprocal %66 {approx = true} : vector<2x8x1xf32> -> vector<2x8x1xf32>
    %70 = vector.broadcast %69 : vector<2x8x1xf32> to vector<2x8x16xf32>
    %71 = arith.mulf %68, %70 : vector<2x8x16xf32>
    %72 = vector.extract_strided_slice %13 {offsets = [0, 0, 48], sizes = [2, 8, 16], strides = [1, 1, 1]} : vector<2x8x64xbf16> to vector<2x8x16xbf16>
    %73 = vector.extract_strided_slice %15 {offsets = [0, 0, 48], sizes = [2, 8, 16], strides = [1, 1, 1]} : vector<2x8x64xbf16> to vector<2x8x16xbf16>
    %74 = vector.extract_strided_slice %17 {offsets = [0, 0, 48], sizes = [2, 8, 16], strides = [1, 1, 1]} : vector<2x8x64xbf16> to vector<2x8x16xbf16>
    "tpu.trace_start"() <{level = 10 : i32, message = "bqd,bkd->bqk"}> : () -> ()
    %cst_28 = arith.constant dense<0.000000e+00> : vector<2x8x8xf32>
    %75 = tpu.matmul %72, %73, %cst_28 {dimension_numbers = #tpu.dot_dimension_numbers<[2], [2], [1], [1], [0, 0, 0, 1, 1, 1], [0], [0]>} : vector<2x8x16xbf16>, vector<2x8x16xbf16>, vector<2x8x8xf32> -> vector<2x8x8xf32>
    "tpu.trace_stop"() : () -> ()
    %cst_29 = arith.constant 2.500000e-01 : f32
    %76 = vector.broadcast %cst_29 : f32 to vector<2x8x8xf32>
    %77 = arith.mulf %75, %76 : vector<2x8x8xf32>
    %cst_30 = arith.constant dense<0xFF800000> : vector<2x8xf32>
    %78 = vector.multi_reduction <maximumf>, %77, %cst_30 [2] : vector<2x8x8xf32> to vector<2x8xf32>
    %79 = vector.shape_cast %78 : vector<2x8xf32> to vector<2x8x1xf32>
    %80 = vector.broadcast %79 : vector<2x8x1xf32> to vector<2x8x8xf32>
    %81 = arith.subf %77, %80 : vector<2x8x8xf32>
    %82 = math.exp %81 : vector<2x8x8xf32>
    %cst_31 = arith.constant dense<0.000000e+00> : vector<2x8xf32>
    %83 = vector.multi_reduction <add>, %82, %cst_31 [2] : vector<2x8x8xf32> to vector<2x8xf32>
    %84 = vector.shape_cast %83 : vector<2x8xf32> to vector<2x8x1xf32>
    %85 = arith.truncf %82 : vector<2x8x8xf32> to vector<2x8x8xbf16>
    "tpu.trace_start"() <{level = 10 : i32, message = "bqk,bkd->bqd"}> : () -> ()
    %cst_32 = arith.constant dense<0.000000e+00> : vector<2x8x16xf32>
    %86 = tpu.matmul %85, %74, %cst_32 {dimension_numbers = #tpu.dot_dimension_numbers<[2], [1], [1], [2], [0, 0, 0, 1, 1, 2], [0], [0]>} : vector<2x8x8xbf16>, vector<2x8x16xbf16>, vector<2x8x16xf32> -> vector<2x8x16xf32>
    "tpu.trace_stop"() : () -> ()
    %87 = tpu.reciprocal %84 {approx = true} : vector<2x8x1xf32> -> vector<2x8x1xf32>
    %88 = vector.broadcast %87 : vector<2x8x1xf32> to vector<2x8x16xf32>
    %89 = arith.mulf %86, %88 : vector<2x8x16xf32>
    %90 = tpu.concatenate %35, %53, %71, %89 in 2 : vector<2x8x16xf32>, vector<2x8x16xf32>, vector<2x8x16xf32>, vector<2x8x16xf32> -> vector<2x8x64xf32>
    %91 = vector.shape_cast %90 : vector<2x8x64xf32> to vector<16x64xf32>
    %92 = arith.truncf %91 : vector<16x64xf32> to vector<16x64xbf16>
    %c0_33 = arith.constant 0 : index
    %c0_34 = arith.constant 0 : index
    %93 = vector.load %arg6[%c0_33, %c0_34] : memref<64x32xbf16, #tpu.memory_space<vmem>>, vector<64x32xbf16>
    %cst_35 = arith.constant dense<0.000000e+00> : vector<16x32xf32>
    %94 = tpu.matmul %92, %93, %cst_35 {dimension_numbers = #tpu.dot_dimension_numbers<[1], [0], [0], [1], [0, 0, 1, 1], [], []>} : vector<16x64xbf16>, vector<64x32xbf16>, vector<16x32xf32> -> vector<16x32xf32>
    %c0_36 = arith.constant 0 : index
    %c0_37 = arith.constant 0 : index
    %95 = vector.load %arg7[%c0_36, %c0_37] : memref<1x32xf32, #tpu.memory_space<vmem>>, vector<1x32xf32>
    %96 = vector.broadcast %95 : vector<1x32xf32> to vector<16x32xf32>
    %97 = arith.addf %94, %96 : vector<16x32xf32>
    %98 = arith.addf %97, %0 : vector<16x32xf32>
    %cst_38 = arith.constant dense<0.000000e+00> : vector<16xf32>
    %99 = vector.multi_reduction <add>, %98, %cst_38 [1] : vector<16x32xf32> to vector<16xf32>
    %100 = vector.shape_cast %99 : vector<16xf32> to vector<16x1xf32>
    %cst_39 = arith.constant 3.200000e+01 : f32
    %101 = vector.broadcast %cst_39 : f32 to vector<16x1xf32>
    %102 = arith.divf %100, %101 : vector<16x1xf32>
    %103 = vector.broadcast %102 : vector<16x1xf32> to vector<16x32xf32>
    %104 = arith.subf %98, %103 : vector<16x32xf32>
    %105 = arith.mulf %104, %104 : vector<16x32xf32>
    %cst_40 = arith.constant dense<0.000000e+00> : vector<16xf32>
    %106 = vector.multi_reduction <add>, %105, %cst_40 [1] : vector<16x32xf32> to vector<16xf32>
    %107 = vector.shape_cast %106 : vector<16xf32> to vector<16x1xf32>
    %cst_41 = arith.constant 3.200000e+01 : f32
    %108 = vector.broadcast %cst_41 : f32 to vector<16x1xf32>
    %109 = arith.divf %107, %108 : vector<16x1xf32>
    %110 = vector.broadcast %102 : vector<16x1xf32> to vector<16x32xf32>
    %111 = arith.subf %98, %110 : vector<16x32xf32>
    %cst_42 = arith.constant 9.99999974E-6 : f32
    %112 = vector.broadcast %cst_42 : f32 to vector<16x1xf32>
    %113 = arith.addf %109, %112 : vector<16x1xf32>
    %114 = math.rsqrt %113 : vector<16x1xf32>
    %115 = vector.broadcast %114 : vector<16x1xf32> to vector<16x32xf32>
    %116 = arith.mulf %111, %115 : vector<16x32xf32>
    %c0_43 = arith.constant 0 : index
    %c0_44 = arith.constant 0 : index
    %117 = vector.load %arg8[%c0_43, %c0_44] : memref<1x32xf32, #tpu.memory_space<vmem>>, vector<1x32xf32>
    %118 = vector.broadcast %117 : vector<1x32xf32> to vector<16x32xf32>
    %119 = arith.mulf %116, %118 : vector<16x32xf32>
    %c0_45 = arith.constant 0 : index
    %c0_46 = arith.constant 0 : index
    %120 = vector.load %arg9[%c0_45, %c0_46] : memref<1x32xf32, #tpu.memory_space<vmem>>, vector<1x32xf32>
    %121 = vector.broadcast %120 : vector<1x32xf32> to vector<16x32xf32>
    %122 = arith.addf %119, %121 : vector<16x32xf32>
    %c0_47 = arith.constant 0 : index
    %c0_48 = arith.constant 0 : index
    %123 = vector.load %arg10[%c0_47, %c0_48] : memref<16x32xf32, #tpu.memory_space<vmem>>, vector<16x32xf32>
    tpu.vector_store %arg10[%c0_47, %c0_48], %122 {strides = array<i32>} : memref<16x32xf32, #tpu.memory_space<vmem>>, vector<16x32xf32>,
    return
  }
}

</mosaic_0001>

<llo_original>
// kernel: tpu_custom_call.1
$region0: #{tpu_custom_call.1}
  #allocation0 [shape = 'u32[]', space=smem, size = 0x4, offset = 0x4, fixed_abs, tag = 'smem constant byte address 0x4 - core index']
  #allocation1 [shape = 'u32[72,128]{1,0:T(1,128)}', space=vmem, size = 0x9000, scoped, tag = 'internal scratch']
  %s0 = inlined_call_operand.vmem [shape: f32[16,32], index: 0, kind: input, shape index: {}]
  %s1 = inlined_call_operand.vmem [shape: f32[16,32], index: 1, kind: input, shape index: {}]
  %s2 = inlined_call_operand.vmem [shape: f32[16,32], index: 2, kind: input, shape index: {}]
  %s3 = inlined_call_operand.hbm [shape: bf16[32,64], index: 3, kind: input, shape index: {}]
  %s4 = inlined_call_operand.hbm [shape: bf16[32,64], index: 4, kind: input, shape index: {}]
  %s5 = inlined_call_operand.hbm [shape: bf16[32,64], index: 5, kind: input, shape index: {}]
  %s6 = inlined_call_operand.vmem [shape: bf16[64,32], index: 6, kind: input, shape index: {}]
  %s7 = inlined_call_operand.vmem [shape: f32[1,32], index: 7, kind: input, shape index: {}]
  %s8 = inlined_call_operand.vmem [shape: f32[1,32], index: 8, kind: input, shape index: {}]
  %s9 = inlined_call_operand.vmem [shape: f32[1,32], index: 9, kind: input, shape index: {}]
  %s10 = inlined_call_operand.hbm [shape: f32[16,32], index: 10, kind: output, shape index: {}]
  %s11 = sld [smem:[#allocation0]]
  $region62: #{tpu_custom_call.1} parent=0
    _
  %s13 = ssub.s32 1, %s11
  %s14 = scalar_select 0, %s13, %s11
  $region1: #{tpu_custom_call.1} parent=0
    #allocation2 [shape = 'u8[8192]{0}', space=vmem, size = 0x2000, scoped, tag = 'input window, operand 3, single buffered']
    #allocation3 [shape = 's32[1]{0}', space=sflag, size = 0x4, scoped, tag = 'scoped memory for tpu_custom_call.1']
    #allocation4 [shape = 's32[1]{0}', space=sflag, size = 0x4, scoped, tag = 'scoped memory for tpu_custom_call.1']
    #allocation5 [shape = 'u8[8192]{0}', space=vmem, size = 0x2000, scoped, tag = 'input window, operand 4, single buffered']
    #allocation6 [shape = 's32[1]{0}', space=sflag, size = 0x4, scoped, tag = 'scoped memory for tpu_custom_call.1']
    #allocation7 [shape = 'u8[8192]{0}', space=vmem, size = 0x2000, scoped, tag = 'input window, operand 5, single buffered']
    #allocation8 [shape = 'u8[8192]{0}', space=vmem, size = 0x2000, scoped, tag = 'output window, operand 0, single buffered']
    %15 = vsyncpa [#allocation3], 0
    %16 = vsyncpa [#allocation6], 0
    %17 = vsyncpa [#allocation4], 0
    // Predicated region
    $region2: #{tpu_custom_call.1} parent=1 // pred_check
      _
    $region3: #{tpu_custom_call.1} parent=1 // pred_check_branch
      %19 = sbr.rel (0) target = $region5
    $region4: #{tpu_custom_call.1} parent=1 // pred_region
      _
    $region5: #{tpu_custom_call.1} parent=1 // pred_fallthru
      _
    // Predicated region
    $region6: #{tpu_custom_call.1} parent=1 // pred_check
      _
    $region7: #{tpu_custom_call.1} parent=1 // pred_check_branch
      %21 = sbr.rel (0) target = $region9
    $region8: #{tpu_custom_call.1} parent=1 // pred_region
      _
    $region9: #{tpu_custom_call.1} parent=1 // pred_fallthru
      _
    // Predicated region
    $region10: #{tpu_custom_call.1} parent=1 // pred_check
      _
    $region11: #{tpu_custom_call.1} parent=1 // pred_check_branch
      %23 = sbr.rel (0) target = $region13
    $region12: #{tpu_custom_call.1} parent=1 // pred_region
      _
    $region13: #{tpu_custom_call.1} parent=1 // pred_fallthru
      _
    // Predicated region
    $region14: #{tpu_custom_call.1} parent=1 // pred_check
      _
    $region15: #{tpu_custom_call.1} parent=1 // pred_check_branch
      %25 = sbr.rel (0) target = $region17
    $region16: #{tpu_custom_call.1} parent=1 // pred_region
      %27 = vsyncadd [#allocation3], 0
      %s28 = sshll.u32 %s3, 4
      %s29 = int_to_ptr.hbm [resolvable:$true] %s28
      %s30 = sshll.u32 [#allocation2], 4
      %s31 = int_to_ptr.vmem [resolvable:$true] %s30
      %36 = dma.hbm_to_vmem [thread:$0]  %s29, 256, %s31, [#allocation3], 64, 64, 4
    $region17: #{tpu_custom_call.1} parent=1 // pred_fallthru
      _
    // Predicated region
    $region18: #{tpu_custom_call.1} parent=1 // pred_check
      _
    $region19: #{tpu_custom_call.1} parent=1 // pred_check_branch
      %38 = sbr.rel (0) target = $region21
    $region20: #{tpu_custom_call.1} parent=1 // pred_region
      %40 = vsyncadd [#allocation6], 0
      %s41 = sshll.u32 %s4, 4
      %s42 = int_to_ptr.hbm [resolvable:$true] %s41
      %s43 = sshll.u32 [#allocation5], 4
      %s44 = int_to_ptr.vmem [resolvable:$true] %s43
      %49 = dma.hbm_to_vmem [thread:$0]  %s42, 256, %s44, [#allocation6], 64, 64, 4
    $region21: #{tpu_custom_call.1} parent=1 // pred_fallthru
      _
    // Predicated region
    $region22: #{tpu_custom_call.1} parent=1 // pred_check
      _
    $region23: #{tpu_custom_call.1} parent=1 // pred_check_branch
      %51 = sbr.rel (0) target = $region25
    $region24: #{tpu_custom_call.1} parent=1 // pred_region
      %53 = vsyncadd [#allocation6], 0
      %s54 = sshll.u32 %s5, 4
      %s55 = int_to_ptr.hbm [resolvable:$true] %s54
      %s56 = sshll.u32 [#allocation7], 4
      %s57 = int_to_ptr.vmem [resolvable:$true] %s56
      %62 = dma.hbm_to_vmem [thread:$0]  %s55, 256, %s57, [#allocation6], 64, 64, 4
    $region25: #{tpu_custom_call.1} parent=1 // pred_fallthru
      _
    // Predicated region
    $region26: #{tpu_custom_call.1} parent=1 // pred_check
      _
    $region27: #{tpu_custom_call.1} parent=1 // pred_check_branch
      %64 = sbr.rel (0) target = $region29
    $region28: #{tpu_custom_call.1} parent=1 // pred_region
      _
    $region29: #{tpu_custom_call.1} parent=1 // pred_fallthru
      _
    // Predicated region
    $region30: #{tpu_custom_call.1} parent=1 // pred_check
      _
    $region31: #{tpu_custom_call.1} parent=1 // pred_check_branch
      %66 = sbr.rel (0) target = $region33
    $region32: #{tpu_custom_call.1} parent=1 // pred_region
      _
    $region33: #{tpu_custom_call.1} parent=1 // pred_fallthru
      _
    // Predicated region
    $region34: #{tpu_custom_call.1} parent=1 // pred_check
      _
    $region35: #{tpu_custom_call.1} parent=1 // pred_check_branch
      %68 = sbr.rel (0) target = $region37
    $region36: #{tpu_custom_call.1} parent=1 // pred_region
      _
    $region37: #{tpu_custom_call.1} parent=1 // pred_fallthru
      _
    // Predicated region
    $region38: #{tpu_custom_call.1} parent=1 // pred_check
      _
    $region39: #{tpu_custom_call.1} parent=1 // pred_check_branch
      %70 = sbr.rel (0) target = $region41
    $region40: #{tpu_custom_call.1} parent=1 // pred_region
      _
    $region41: #{tpu_custom_call.1} parent=1 // pred_fallthru
      _
    // Predicated region
    $region42: #{tpu_custom_call.1} parent=1 // pred_check
      _
    $region43: #{tpu_custom_call.1} parent=1 // pred_check_branch
      %72 = sbr.rel (0) target = $region45
    $region44: #{tpu_custom_call.1} parent=1 // pred_region
      %74 = dma.done [#allocation3], 256
    $region45: #{tpu_custom_call.1} parent=1 // pred_fallthru
      _
    // Predicated region
    $region46: #{tpu_custom_call.1} parent=1 // pred_check
      _
    $region47: #{tpu_custom_call.1} parent=1 // pred_check_branch
      %76 = sbr.rel (0) target = $region49
    $region48: #{tpu_custom_call.1} parent=1 // pred_region
      %78 = dma.done [#allocation6], 256
    $region49: #{tpu_custom_call.1} parent=1 // pred_fallthru
      _
    // Predicated region
    $region50: #{tpu_custom_call.1} parent=1 // pred_check
      _
    $region51: #{tpu_custom_call.1} parent=1 // pred_check_branch
      %80 = sbr.rel (0) target = $region53
    $region52: #{tpu_custom_call.1} parent=1 // pred_region
      %82 = dma.done [#allocation6], 256
    $region53: #{tpu_custom_call.1} parent=1 // pred_fallthru
      _
    %v84 = vld [vmem:[%s0] sm:$0xff]
    %v85 = vld [vmem:[%s0 + $0x8] sm:$0xff]
    %v86 = vld [vmem:[%s1] sm:$0xff]
    %v87 = vld [vmem:[%s1 + $0x8] sm:$0xff]
    %v88 = vld [vmem:[%s2] sm:$0xff]
    %v89 = vld [vmem:[%s2 + $0x8] sm:$0xff]
    %v90 = vpack.c.bf16 %v85, %v84
    %v91 = vld [vmem:[#allocation2] sm:$0xf]
    %v92 = vld [vmem:[#allocation2 + $0x4] sm:$0xf]
    %v93 = vld [vmem:[#allocation2 + $0x8] sm:$0xf]
    %v94 = vld [vmem:[#allocation2 + $0xc] sm:$0xf]
    %v99 = vunpack.c.l.b16 %v91
    %v100 = vunpack.c.l.b16 %v92
    %v101 = vunpack.c.l.b16 %v93
    %v102 = vunpack.c.l.b16 %v94
    %v103 = vpack.c.b16 %v100, %v99
    %v104 = vpack.c.b16 %v102, %v101
    %vm107 = vcmask 261120
    %v109 = vsel %vm107, %v90, 0
    %111 = vmatpush.bf16.msra.mxu0 0
    %112 = vmatpush.bf16.msra.mxu0 0
    %113 = vmatpush.bf16.msra.mxu0 0
    %114 = vmatpush.bf16.msra.mxu0 0
    %115 = vmatpush.bf16.msra.mxu0 0
    %116 = vmatpush.bf16.msra.mxu0 0
    %117 = vmatpush.bf16.msra.mxu0 %v104
    %118 = vmatpush.bf16.msra.mxu0 %v103
    %119 = vmatmul.bf16.gmra.mxu0 %v109
    %v120 = vpop.f32.mrf.mxu0
    %v121 = vadd.f32 0.0, %v120
    %v122 = vpop.f32.mrf.mxu0
    %v123 = vadd.f32 0.0, %v122
    %124 = vdwg.mxu0
    %v125 = vpack.c.bf16 %v87, %v86
    %v126 = vld [vmem:[#allocation5] sm:$0xf]
    %v127 = vld [vmem:[#allocation5 + $0x4] sm:$0xf]
    %v128 = vld [vmem:[#allocation5 + $0x8] sm:$0xf]
    %v129 = vld [vmem:[#allocation5 + $0xc] sm:$0xf]
    %v134 = vunpack.c.l.b16 %v126
    %v135 = vunpack.c.l.b16 %v127
    %v136 = vunpack.c.l.b16 %v128
    %v137 = vunpack.c.l.b16 %v129
    %v138 = vpack.c.b16 %v135, %v134
    %v139 = vpack.c.b16 %v137, %v136
    %v143 = vsel %vm107, %v125, 0
    %145 = vmatpush.bf16.msra.mxu0 0
    %146 = vmatpush.bf16.msra.mxu0 0
    %147 = vmatpush.bf16.msra.mxu0 0
    %148 = vmatpush.bf16.msra.mxu0 0
    %149 = vmatpush.bf16.msra.mxu0 0
    %150 = vmatpush.bf16.msra.mxu0 0
    %151 = vmatpush.bf16.msra.mxu0 %v139
    %152 = vmatpush.bf16.msra.mxu0 %v138
    %153 = vmatmul.bf16.gmra.mxu0 %v143
    %v154 = vpop.f32.mrf.mxu0
    %v155 = vadd.f32 0.0, %v154
    %v156 = vpop.f32.mrf.mxu0
    %v157 = vadd.f32 0.0, %v156
    %158 = vdwg.mxu0
    %v159 = vpack.c.bf16 %v89, %v88
    %v160 = vld [vmem:[#allocation7] sm:$0xf]
    %v161 = vld [vmem:[#allocation7 + $0x4] sm:$0xf]
    %v162 = vld [vmem:[#allocation7 + $0x8] sm:$0xf]
    %v163 = vld [vmem:[#allocation7 + $0xc] sm:$0xf]
    %v168 = vunpack.c.l.b16 %v160
    %v169 = vunpack.c.l.b16 %v161
    %v170 = vunpack.c.l.b16 %v162
    %v171 = vunpack.c.l.b16 %v163
    %v172 = vpack.c.b16 %v169, %v168
    %v173 = vpack.c.b16 %v171, %v170
    %v177 = vsel %vm107, %v159, 0
    %179 = vmatpush.bf16.msra.mxu0 0
    %180 = vmatpush.bf16.msra.mxu0 0
    %181 = vmatpush.bf16.msra.mxu0 0
    %182 = vmatpush.bf16.msra.mxu0 0
    %183 = vmatpush.bf16.msra.mxu0 0
    %184 = vmatpush.bf16.msra.mxu0 0
    %185 = vmatpush.bf16.msra.mxu0 %v173
    %186 = vmatpush.bf16.msra.mxu0 %v172
    %187 = vmatmul.bf16.gmra.mxu0 %v177
    %v188 = vpop.f32.mrf.mxu0
    %v189 = vadd.f32 0.0, %v188
    %v190 = vpop.f32.mrf.mxu0
    %v191 = vadd.f32 0.0, %v190
    %192 = vdwg.mxu0
    %v193 = vpack.c.bf16 %v121, %v121
    %v194 = vpack.c.bf16 %v123, %v123
    %v195 = vpack.c.bf16 %v155, %v155
    %v196 = vpack.c.bf16 %v157, %v157
    %v197 = vpack.c.bf16 %v189, %v189
    %v198 = vpack.c.bf16 %v191, %v191
    %vm199 = vcmask 130048
    %v201 = vsel %vm199, %v193, 0
    %v204 = vsel %vm199, %v195, 0
    %206 = vmatpush.bf16.xpose.msra.mxu0 0
    %207 = vmatpush.bf16.xpose.msra.mxu0 0
    %208 = vmatpush.bf16.xpose.msra.mxu0 0
    %209 = vmatpush.bf16.xpose.msra.mxu0 0
    %210 = vmatpush.bf16.xpose.msra.mxu0 0
    %211 = vmatpush.bf16.xpose.msra.mxu0 0
    %212 = vmatpush.bf16.xpose.msra.mxu0 0
    %213 = vmatpush.bf16.xpose.msra.mxu0 %v204
    %214 = vmatmul.bf16.gmra.mxu0 %v201
    %v215 = vpop.f32.mrf.mxu0
    %v216 = vadd.f32 0.0, %v215
    %v217 = vpop.f32.mrf.mxu0
    %218 = vdwg.mxu0
    %v220 = vsel %vm199, %v194, 0
    %v223 = vsel %vm199, %v196, 0
    %225 = vmatpush.bf16.xpose.msra.mxu0 0
    %226 = vmatpush.bf16.xpose.msra.mxu0 0
    %227 = vmatpush.bf16.xpose.msra.mxu0 0
    %228 = vmatpush.bf16.xpose.msra.mxu0 0
    %229 = vmatpush.bf16.xpose.msra.mxu0 0
    %230 = vmatpush.bf16.xpose.msra.mxu0 0
    %231 = vmatpush.bf16.xpose.msra.mxu0 0
    %232 = vmatpush.bf16.xpose.msra.mxu0 %v223
    %233 = vmatmul.bf16.gmra.mxu0 %v220
    %v234 = vpop.f32.mrf.mxu0
    %v235 = vadd.f32 0.0, %v234
    %v236 = vpop.f32.mrf.mxu0
    %237 = vdwg.mxu0
    %v238 = vmul.f32 %v216, 0.25
    %v239 = vmul.f32 %v235, 0.25
    %vm240 = vcmask 64512
    %v241 = vsel %vm240, %v238, -inf
    %242 = vmax.xlane.f32.xlu0 %v241
    %v243 = vpop.xlane.xlu0 %242
    %v244 = vsel %vm240, %v239, -inf
    %245 = vmax.xlane.f32.xlu0 %v244
    %v246 = vpop.xlane.xlu0 %245
    %v247 = vsub.f32 %v238, %v243
    %v248 = vsub.f32 %v239, %v246
    %v249 = vmul.f32 %v247, 1.442695
    %v250 = vpow.pop %v249
    %v251 = vmul.f32 %v248, 1.442695
    %v252 = vpow.pop %v251
    %v253 = vsel %vm240, %v250, 0.0
    %254 = vadd.xlane.f32.xlu0 %v253
    %v255 = vpop.xlane.xlu0 %254
    %v256 = vsel %vm240, %v252, 0.0
    %257 = vadd.xlane.f32.xlu0 %v256
    %v258 = vpop.xlane.xlu0 %257
    %v259 = vpack.c.bf16 %v250, %v250
    %v260 = vpack.c.bf16 %v252, %v252
    %v262 = vsel %vm240, %v259, 0
    %vm264 = vcmask 1043456
    %v266 = vsel %vm264, %v197, 0
    %268 = vmatpush.bf16.msra.mxu0 0
    %269 = vmatpush.bf16.msra.mxu0 0
    %270 = vmatpush.bf16.msra.mxu0 0
    %271 = vmatpush.bf16.msra.mxu0 0
    %272 = vmatpush.bf16.msra.mxu0 0
    %273 = vmatpush.bf16.msra.mxu0 0
    %274 = vmatpush.bf16.msra.mxu0 0
    %275 = vmatpush.bf16.msra.mxu0 %v266
    %276 = vmatmul.bf16.gmra.mxu0 %v262
    %v277 = vpop.f32.mrf.mxu0
    %v278 = vadd.f32 0.0, %v277
    %v279 = vpop.f32.mrf.mxu0
    %280 = vdwg.mxu0
    %v282 = vsel %vm240, %v260, 0
    %v285 = vsel %vm264, %v198, 0
    %287 = vmatpush.bf16.msra.mxu0 0
    %288 = vmatpush.bf16.msra.mxu0 0
    %289 = vmatpush.bf16.msra.mxu0 0
    %290 = vmatpush.bf16.msra.mxu0 0
    %291 = vmatpush.bf16.msra.mxu0 0
    %292 = vmatpush.bf16.msra.mxu0 0
    %293 = vmatpush.bf16.msra.mxu0 0
    %294 = vmatpush.bf16.msra.mxu0 %v285
    %295 = vmatmul.bf16.gmra.mxu0 %v282
    %v296 = vpop.f32.mrf.mxu0
    %v297 = vadd.f32 0.0, %v296
    %v298 = vpop.f32.mrf.mxu0
    %299 = vdwg.mxu0
    %v300 = vrcp.pop %v255
    %v301 = vrcp.pop %v258
    %v302 = vmul.f32 %v278, %v300
    %v303 = vmul.f32 %v297, %v301
    %v305 = vunpack.c.l.b16 %v193
    %v306 = vpack.c.b16 %v305, %v305
    %307 = vrot.lane.b32.xlu0 %v306, 112
    %v308 = vpop.permute.xlu0 %307
    %v310 = vunpack.c.l.b16 %v195
    %v311 = vpack.c.b16 %v310, %v310
    %312 = vrot.lane.b32.xlu0 %v311, 112
    %v313 = vpop.permute.xlu0 %312
    %v315 = vsel %vm199, %v308, 0
    %v318 = vsel %vm199, %v313, 0
    %320 = vmatpush.bf16.xpose.msra.mxu0 0
    %321 = vmatpush.bf16.xpose.msra.mxu0 0
    %322 = vmatpush.bf16.xpose.msra.mxu0 0
    %323 = vmatpush.bf16.xpose.msra.mxu0 0
    %324 = vmatpush.bf16.xpose.msra.mxu0 0
    %325 = vmatpush.bf16.xpose.msra.mxu0 0
    %326 = vmatpush.bf16.xpose.msra.mxu0 0
    %327 = vmatpush.bf16.xpose.msra.mxu0 %v318
    %328 = vmatmul.bf16.gmra.mxu0 %v315
    %v329 = vpop.f32.mrf.mxu0
    %v330 = vadd.f32 0.0, %v329
    %v331 = vpop.f32.mrf.mxu0
    %332 = vdwg.mxu0
    %v334 = vunpack.c.l.b16 %v194
    %v335 = vpack.c.b16 %v334, %v334
    %336 = vrot.lane.b32.xlu0 %v335, 112
    %v337 = vpop.permute.xlu0 %336
    %v339 = vunpack.c.l.b16 %v196
    %v340 = vpack.c.b16 %v339, %v339
    %341 = vrot.lane.b32.xlu0 %v340, 112
    %v342 = vpop.permute.xlu0 %341
    %v344 = vsel %vm199, %v337, 0
    %v347 = vsel %vm199, %v342, 0
    %349 = vmatpush.bf16.xpose.msra.mxu0 0
    %350 = vmatpush.bf16.xpose.msra.mxu0 0
    %351 = vmatpush.bf16.xpose.msra.mxu0 0
    %352 = vmatpush.bf16.xpose.msra.mxu0 0
    %353 = vmatpush.bf16.xpose.msra.mxu0 0
    %354 = vmatpush.bf16.xpose.msra.mxu0 0
    %355 = vmatpush.bf16.xpose.msra.mxu0 0
    %356 = vmatpush.bf16.xpose.msra.mxu0 %v347
    %357 = vmatmul.bf16.gmra.mxu0 %v344
    %v358 = vpop.f32.mrf.mxu0
    %v359 = vadd.f32 0.0, %v358
    %v360 = vpop.f32.mrf.mxu0
    %361 = vdwg.mxu0
    %v362 = vmul.f32 %v330, 0.25
    %v363 = vmul.f32 %v359, 0.25
    %v364 = vsel %vm240, %v362, -inf
    %365 = vmax.xlane.f32.xlu0 %v364
    %v366 = vpop.xlane.xlu0 %365
    %v367 = vsel %vm240, %v363, -inf
    %368 = vmax.xlane.f32.xlu0 %v367
    %v369 = vpop.xlane.xlu0 %368
    %v370 = vsub.f32 %v362, %v366
    %v371 = vsub.f32 %v363, %v369
    %v372 = vmul.f32 %v370, 1.442695
    %v373 = vpow.pop %v372
    %v374 = vmul.f32 %v371, 1.442695
    %v375 = vpow.pop %v374
    %v376 = vsel %vm240, %v373, 0.0
    %377 = vadd.xlane.f32.xlu0 %v376
    %v378 = vpop.xlane.xlu0 %377
    %v379 = vsel %vm240, %v375, 0.0
    %380 = vadd.xlane.f32.xlu0 %v379
    %v381 = vpop.xlane.xlu0 %380
    %v382 = vpack.c.bf16 %v373, %v373
    %v383 = vpack.c.bf16 %v375, %v375
    %v385 = vunpack.c.l.b16 %v197
    %v386 = vpack.c.b16 %v385, %v385
    %387 = vrot.lane.b32.xlu0 %v386, 112
    %v388 = vpop.permute.xlu0 %387
    %v390 = vsel %vm240, %v382, 0
    %v393 = vsel %vm264, %v388, 0
    %395 = vmatpush.bf16.msra.mxu0 0
    %396 = vmatpush.bf16.msra.mxu0 0
    %397 = vmatpush.bf16.msra.mxu0 0
    %398 = vmatpush.bf16.msra.mxu0 0
    %399 = vmatpush.bf16.msra.mxu0 0
    %400 = vmatpush.bf16.msra.mxu0 0
    %401 = vmatpush.bf16.msra.mxu0 0
    %402 = vmatpush.bf16.msra.mxu0 %v393
    %403 = vmatmul.bf16.gmra.mxu0 %v390
    %v404 = vpop.f32.mrf.mxu0
    %v405 = vadd.f32 0.0, %v404
    %v406 = vpop.f32.mrf.mxu0
    %407 = vdwg.mxu0
    %v409 = vunpack.c.l.b16 %v198
    %v410 = vpack.c.b16 %v409, %v409
    %411 = vrot.lane.b32.xlu0 %v410, 112
    %v412 = vpop.permute.xlu0 %411
    %v414 = vsel %vm240, %v383, 0
    %v417 = vsel %vm264, %v412, 0
    %419 = vmatpush.bf16.msra.mxu0 0
    %420 = vmatpush.bf16.msra.mxu0 0
    %421 = vmatpush.bf16.msra.mxu0 0
    %422 = vmatpush.bf16.msra.mxu0 0
    %423 = vmatpush.bf16.msra.mxu0 0
    %424 = vmatpush.bf16.msra.mxu0 0
    %425 = vmatpush.bf16.msra.mxu0 0
    %426 = vmatpush.bf16.msra.mxu0 %v417
    %427 = vmatmul.bf16.gmra.mxu0 %v414
    %v428 = vpop.f32.mrf.mxu0
    %v429 = vadd.f32 0.0, %v428
    %v430 = vpop.f32.mrf.mxu0
    %431 = vdwg.mxu0
    %v432 = vrcp.pop %v378
    %v433 = vrcp.pop %v381
    %v434 = vmul.f32 %v405, %v432
    %v435 = vmul.f32 %v429, %v433
    %436 = vrot.lane.b32.xlu0 %v306, 96
    %v437 = vpop.permute.xlu0 %436
    %438 = vrot.lane.b32.xlu0 %v311, 96
    %v439 = vpop.permute.xlu0 %438
    %v441 = vsel %vm199, %v437, 0
    %v444 = vsel %vm199, %v439, 0
    %446 = vmatpush.bf16.xpose.msra.mxu0 0
    %447 = vmatpush.bf16.xpose.msra.mxu0 0
    %448 = vmatpush.bf16.xpose.msra.mxu0 0
    %449 = vmatpush.bf16.xpose.msra.mxu0 0
    %450 = vmatpush.bf16.xpose.msra.mxu0 0
    %451 = vmatpush.bf16.xpose.msra.mxu0 0
    %452 = vmatpush.bf16.xpose.msra.mxu0 0
    %453 = vmatpush.bf16.xpose.msra.mxu0 %v444
    %454 = vmatmul.bf16.gmra.mxu0 %v441
    %v455 = vpop.f32.mrf.mxu0
    %v456 = vadd.f32 0.0, %v455
    %v457 = vpop.f32.mrf.mxu0
    %458 = vdwg.mxu0
    %459 = vrot.lane.b32.xlu0 %v335, 96
    %v460 = vpop.permute.xlu0 %459
    %461 = vrot.lane.b32.xlu0 %v340, 96
    %v462 = vpop.permute.xlu0 %461
    %v464 = vsel %vm199, %v460, 0
    %v467 = vsel %vm199, %v462, 0
    %469 = vmatpush.bf16.xpose.msra.mxu0 0
    %470 = vmatpush.bf16.xpose.msra.mxu0 0
    %471 = vmatpush.bf16.xpose.msra.mxu0 0
    %472 = vmatpush.bf16.xpose.msra.mxu0 0
    %473 = vmatpush.bf16.xpose.msra.mxu0 0
    %474 = vmatpush.bf16.xpose.msra.mxu0 0
    %475 = vmatpush.bf16.xpose.msra.mxu0 0
    %476 = vmatpush.bf16.xpose.msra.mxu0 %v467
    %477 = vmatmul.bf16.gmra.mxu0 %v464
    %v478 = vpop.f32.mrf.mxu0
    %v479 = vadd.f32 0.0, %v478
    %v480 = vpop.f32.mrf.mxu0
    %481 = vdwg.mxu0
    %v482 = vmul.f32 %v456, 0.25
    %v483 = vmul.f32 %v479, 0.25
    %v484 = vsel %vm240, %v482, -inf
    %485 = vmax.xlane.f32.xlu0 %v484
    %v486 = vpop.xlane.xlu0 %485
    %v487 = vsel %vm240, %v483, -inf
    %488 = vmax.xlane.f32.xlu0 %v487
    %v489 = vpop.xlane.xlu0 %488
    %v490 = vsub.f32 %v482, %v486
    %v491 = vsub.f32 %v483, %v489
    %v492 = vmul.f32 %v490, 1.442695
    %v493 = vpow.pop %v492
    %v494 = vmul.f32 %v491, 1.442695
    %v495 = vpow.pop %v494
    %v496 = vsel %vm240, %v493, 0.0
    %497 = vadd.xlane.f32.xlu0 %v496
    %v498 = vpop.xlane.xlu0 %497
    %v499 = vsel %vm240, %v495, 0.0
    %500 = vadd.xlane.f32.xlu0 %v499
    %v501 = vpop.xlane.xlu0 %500
    %v502 = vpack.c.bf16 %v493, %v493
    %v503 = vpack.c.bf16 %v495, %v495
    %504 = vrot.lane.b32.xlu0 %v386, 96
    %v505 = vpop.permute.xlu0 %504
    %v507 = vsel %vm240, %v502, 0
    %v510 = vsel %vm264, %v505, 0
    %512 = vmatpush.bf16.msra.mxu0 0
    %513 = vmatpush.bf16.msra.mxu0 0
    %514 = vmatpush.bf16.msra.mxu0 0
    %515 = vmatpush.bf16.msra.mxu0 0
    %516 = vmatpush.bf16.msra.mxu0 0
    %517 = vmatpush.bf16.msra.mxu0 0
    %518 = vmatpush.bf16.msra.mxu0 0
    %519 = vmatpush.bf16.msra.mxu0 %v510
    %520 = vmatmul.bf16.gmra.mxu0 %v507
    %v521 = vpop.f32.mrf.mxu0
    %v522 = vadd.f32 0.0, %v521
    %v523 = vpop.f32.mrf.mxu0
    %524 = vdwg.mxu0
    %525 = vrot.lane.b32.xlu0 %v410, 96
    %v526 = vpop.permute.xlu0 %525
    %v528 = vsel %vm240, %v503, 0
    %v531 = vsel %vm264, %v526, 0
    %533 = vmatpush.bf16.msra.mxu0 0
    %534 = vmatpush.bf16.msra.mxu0 0
    %535 = vmatpush.bf16.msra.mxu0 0
    %536 = vmatpush.bf16.msra.mxu0 0
    %537 = vmatpush.bf16.msra.mxu0 0
    %538 = vmatpush.bf16.msra.mxu0 0
    %539 = vmatpush.bf16.msra.mxu0 0
    %540 = vmatpush.bf16.msra.mxu0 %v531
    %541 = vmatmul.bf16.gmra.mxu0 %v528
    %v542 = vpop.f32.mrf.mxu0
    %v543 = vadd.f32 0.0, %v542
    %v544 = vpop.f32.mrf.mxu0
    %545 = vdwg.mxu0
    %v546 = vrcp.pop %v498
    %v547 = vrcp.pop %v501
    %v548 = vmul.f32 %v522, %v546
    %v549 = vmul.f32 %v543, %v547
    %550 = vrot.lane.b32.xlu0 %v306, 80
    %v551 = vpop.permute.xlu0 %550
    %552 = vrot.lane.b32.xlu0 %v311, 80
    %v553 = vpop.permute.xlu0 %552
    %v555 = vsel %vm199, %v551, 0
    %v558 = vsel %vm199, %v553, 0
    %560 = vmatpush.bf16.xpose.msra.mxu0 0
    %561 = vmatpush.bf16.xpose.msra.mxu0 0
    %562 = vmatpush.bf16.xpose.msra.mxu0 0
    %563 = vmatpush.bf16.xpose.msra.mxu0 0
    %564 = vmatpush.bf16.xpose.msra.mxu0 0
    %565 = vmatpush.bf16.xpose.msra.mxu0 0
    %566 = vmatpush.bf16.xpose.msra.mxu0 0
    %567 = vmatpush.bf16.xpose.msra.mxu0 %v558
    %568 = vmatmul.bf16.gmra.mxu0 %v555
    %v569 = vpop.f32.mrf.mxu0
    %v570 = vadd.f32 0.0, %v569
    %v571 = vpop.f32.mrf.mxu0
    %572 = vdwg.mxu0
    %573 = vrot.lane.b32.xlu0 %v335, 80
    %v574 = vpop.permute.xlu0 %573
    %575 = vrot.lane.b32.xlu0 %v340, 80
    %v576 = vpop.permute.xlu0 %575
    %v578 = vsel %vm199, %v574, 0
    %v581 = vsel %vm199, %v576, 0
    %583 = vmatpush.bf16.xpose.msra.mxu0 0
    %584 = vmatpush.bf16.xpose.msra.mxu0 0
    %585 = vmatpush.bf16.xpose.msra.mxu0 0
    %586 = vmatpush.bf16.xpose.msra.mxu0 0
    %587 = vmatpush.bf16.xpose.msra.mxu0 0
    %588 = vmatpush.bf16.xpose.msra.mxu0 0
    %589 = vmatpush.bf16.xpose.msra.mxu0 0
    %590 = vmatpush.bf16.xpose.msra.mxu0 %v581
    %591 = vmatmul.bf16.gmra.mxu0 %v578
    %v592 = vpop.f32.mrf.mxu0
    %v593 = vadd.f32 0.0, %v592
    %v594 = vpop.f32.mrf.mxu0
    %595 = vdwg.mxu0
    %v596 = vmul.f32 %v570, 0.25
    %v597 = vmul.f32 %v593, 0.25
    %v598 = vsel %vm240, %v596, -inf
    %599 = vmax.xlane.f32.xlu0 %v598
    %v600 = vpop.xlane.xlu0 %599
    %v601 = vsel %vm240, %v597, -inf
    %602 = vmax.xlane.f32.xlu0 %v601
    %v603 = vpop.xlane.xlu0 %602
    %v604 = vsub.f32 %v596, %v600
    %v605 = vsub.f32 %v597, %v603
    %v606 = vmul.f32 %v604, 1.442695
    %v607 = vpow.pop %v606
    %v608 = vmul.f32 %v605, 1.442695
    %v609 = vpow.pop %v608
    %v610 = vsel %vm240, %v607, 0.0
    %611 = vadd.xlane.f32.xlu0 %v610
    %v612 = vpop.xlane.xlu0 %611
    %v613 = vsel %vm240, %v609, 0.0
    %614 = vadd.xlane.f32.xlu0 %v613
    %v615 = vpop.xlane.xlu0 %614
    %v616 = vpack.c.bf16 %v607, %v607
    %v617 = vpack.c.bf16 %v609, %v609
    %618 = vrot.lane.b32.xlu0 %v386, 80
    %v619 = vpop.permute.xlu0 %618
    %v621 = vsel %vm240, %v616, 0
    %v624 = vsel %vm264, %v619, 0
    %626 = vmatpush.bf16.msra.mxu0 0
    %627 = vmatpush.bf16.msra.mxu0 0
    %628 = vmatpush.bf16.msra.mxu0 0
    %629 = vmatpush.bf16.msra.mxu0 0
    %630 = vmatpush.bf16.msra.mxu0 0
    %631 = vmatpush.bf16.msra.mxu0 0
    %632 = vmatpush.bf16.msra.mxu0 0
    %633 = vmatpush.bf16.msra.mxu0 %v624
    %634 = vmatmul.bf16.gmra.mxu0 %v621
    %v635 = vpop.f32.mrf.mxu0
    %v636 = vadd.f32 0.0, %v635
    %v637 = vpop.f32.mrf.mxu0
    %638 = vdwg.mxu0
    %639 = vrot.lane.b32.xlu0 %v410, 80
    %v640 = vpop.permute.xlu0 %639
    %v642 = vsel %vm240, %v617, 0
    %v645 = vsel %vm264, %v640, 0
    %647 = vmatpush.bf16.msra.mxu0 0
    %648 = vmatpush.bf16.msra.mxu0 0
    %649 = vmatpush.bf16.msra.mxu0 0
    %650 = vmatpush.bf16.msra.mxu0 0
    %651 = vmatpush.bf16.msra.mxu0 0
    %652 = vmatpush.bf16.msra.mxu0 0
    %653 = vmatpush.bf16.msra.mxu0 0
    %654 = vmatpush.bf16.msra.mxu0 %v645
    %655 = vmatmul.bf16.gmra.mxu0 %v642
    %v656 = vpop.f32.mrf.mxu0
    %v657 = vadd.f32 0.0, %v656
    %v658 = vpop.f32.mrf.mxu0
    %659 = vdwg.mxu0
    %v660 = vrcp.pop %v612
    %v661 = vrcp.pop %v615
    %v662 = vmul.f32 %v636, %v660
    %v663 = vmul.f32 %v657, %v661
    %666 = vrot.lane.b32.xlu0 %v434, 16
    %v667 = vpop.permute.xlu0 %666
    %668 = vrot.lane.b32.xlu0 %v435, 16
    %v669 = vpop.permute.xlu0 %668
    %674 = vrot.lane.b32.xlu0 %v548, 32
    %v675 = vpop.permute.xlu0 %674
    %676 = vrot.lane.b32.xlu0 %v549, 32
    %v677 = vpop.permute.xlu0 %676
    %682 = vrot.lane.b32.xlu0 %v662, 48
    %v683 = vpop.permute.xlu0 %682
    %684 = vrot.lane.b32.xlu0 %v663, 48
    %v685 = vpop.permute.xlu0 %684
    %v688 = vsel %vm199, %v302, %v667
    %v689 = vsel %vm199, %v303, %v669
    %v690 = vsel %vm107, %v688, %v675
    %v691 = vsel %vm107, %v689, %v677
    %vm692 = vcmask 392192
    %v693 = vsel %vm692, %v690, %v683
    %v694 = vsel %vm692, %v691, %v685
    %v695 = vpack.c.bf16 %v694, %v693
    %v696 = vld [vmem:[%s6] sm:$0xf]
    %v697 = vld [vmem:[%s6 + $0x4] sm:$0xf]
    %v698 = vld [vmem:[%s6 + $0x8] sm:$0xf]
    %v699 = vld [vmem:[%s6 + $0xc] sm:$0xf]
    %v700 = vld [vmem:[%s6 + $0x10] sm:$0xf]
    %v701 = vld [vmem:[%s6 + $0x14] sm:$0xf]
    %v702 = vld [vmem:[%s6 + $0x18] sm:$0xf]
    %v703 = vld [vmem:[%s6 + $0x1c] sm:$0xf]
    %v704 = vld [vmem:[%s7] sm:$0x1]
    %v706 = vperm.slane %v704, 0
    %v716 = vunpack.c.l.b16 %v696
    %v717 = vunpack.c.l.b16 %v697
    %v718 = vunpack.c.l.b16 %v698
    %v719 = vunpack.c.l.b16 %v699
    %v720 = vunpack.c.l.b16 %v700
    %v721 = vunpack.c.l.b16 %v701
    %v722 = vunpack.c.l.b16 %v702
    %v723 = vunpack.c.l.b16 %v703
    %v724 = vpack.c.b16 %v717, %v716
    %v725 = vpack.c.b16 %v719, %v718
    %v726 = vpack.c.b16 %v721, %v720
    %v727 = vpack.c.b16 %v723, %v722
    %vm732 = vcmask 523264
    %v734 = vsel %vm732, %v695, 0
    %736 = vmatpush.bf16.msra.mxu0 0
    %737 = vmatpush.bf16.msra.mxu0 0
    %738 = vmatpush.bf16.msra.mxu0 0
    %739 = vmatpush.bf16.msra.mxu0 0
    %740 = vmatpush.bf16.msra.mxu0 %v727
    %741 = vmatpush.bf16.msra.mxu0 %v726
    %742 = vmatpush.bf16.msra.mxu0 %v725
    %743 = vmatpush.bf16.msra.mxu0 %v724
    %744 = vmatmul.bf16.gmra.mxu0 %v734
    %v745 = vpop.f32.mrf.mxu0
    %v746 = vadd.f32 %v706, %v745
    %v747 = vpop.f32.mrf.mxu0
    %v748 = vadd.f32 %v706, %v747
    %749 = vdwg.mxu0
    %v750 = vadd.f32 %v746, %v84
    %v751 = vadd.f32 %v748, %v85
    %v752 = vsel %vm107, %v750, 0.0
    %753 = vadd.xlane.f32.xlu0 %v752
    %v754 = vpop.xlane.xlu0 %753
    %v755 = vsel %vm107, %v751, 0.0
    %756 = vadd.xlane.f32.xlu0 %v755
    %v757 = vpop.xlane.xlu0 %756
    %v758 = vrcp.pop 32.0
    %v759 = vmul.f32 32.0, %v758
    %v760 = vsub.f32 1.0, %v759
    %v761 = vmul.f32 %v758, %v760
    %v762 = vadd.f32 %v758, %v761
    %vm763 = vweird.f32 %v758
    %v764 = vsel %vm763, %v758, %v762
    %v765 = vmul.f32 %v754, %v764
    %v766 = vmul.f32 %v757, %v764
    %v767 = vsub.f32 %v750, %v765
    %v768 = vsub.f32 %v751, %v766
    %v769 = vmul.f32 %v767, %v767
    %v770 = vmul.f32 %v768, %v768
    %v771 = vsel %vm107, %v769, 0.0
    %772 = vadd.xlane.f32.xlu0 %v771
    %v773 = vpop.xlane.xlu0 %772
    %v774 = vsel %vm107, %v770, 0.0
    %775 = vadd.xlane.f32.xlu0 %v774
    %v776 = vpop.xlane.xlu0 %775
    %v777 = vmul.f32 %v773, %v764
    %v778 = vmul.f32 %v776, %v764
    %v779 = vadd.f32 %v777, 1e-05
    %v780 = vadd.f32 %v778, 1e-05
    %v781 = vrsqrt.pop %v779
    %v782 = vmul.f32 %v781, %v779
    %v783 = vmul.f32 %v782, %v781
    %v784 = vmul.f32 0.5, %v783
    %v785 = vsub.f32 1.5, %v784
    %v786 = vmul.f32 %v781, %v785
    %vm787 = vweird.f32 %v779
    %vm788 = vweird.f32 %v781
    %vm789 = vmor %vm787, %vm788
    %v790 = vsel %vm789, %v781, %v786
    %v791 = vrsqrt.pop %v780
    %v792 = vmul.f32 %v791, %v780
    %v793 = vmul.f32 %v792, %v791
    %v794 = vmul.f32 0.5, %v793
    %v795 = vsub.f32 1.5, %v794
    %v796 = vmul.f32 %v791, %v795
    %vm797 = vweird.f32 %v780
    %vm798 = vweird.f32 %v791
    %vm799 = vmor %vm797, %vm798
    %v800 = vsel %vm799, %v791, %v796
    %v801 = vmul.f32 %v767, %v790
    %v802 = vmul.f32 %v768, %v800
    %v803 = vld [vmem:[%s8] sm:$0x1]
    %v805 = vperm.slane %v803, 0
    %v807 = vmul.f32 %v801, %v805
    %v808 = vmul.f32 %v802, %v805
    %v809 = vld [vmem:[%s9] sm:$0x1]
    %v811 = vperm.slane %v809, 0
    %v813 = vadd.f32 %v807, %v811
    %v814 = vadd.f32 %v808, %v811
    %815 = vst.msk [vmem:[#allocation8] sm:$0xff] %vm107, %v813
    %816 = vst.msk [vmem:[#allocation8 + $0x8] sm:$0xff] %vm107, %v814
    // Predicated region
    $region54: #{tpu_custom_call.1} parent=1 // pred_check
      _
    $region55: #{tpu_custom_call.1} parent=1 // pred_check_branch
      %818 = sbr.rel (0) target = $region57
    $region56: #{tpu_custom_call.1} parent=1 // pred_region
      %820 = vsyncadd [#allocation4], 0
      %s821 = sshll.u32 [#allocation8], 4
      %s822 = int_to_ptr.vmem [resolvable:$true] %s821
      %s823 = sshll.u32 %s10, 4
      %s824 = int_to_ptr.hbm [resolvable:$true] %s823
      %829 = dma.vmem_to_hbm [thread:$0]  %s822, 256, %s824, [#allocation4], 128, 128, 8
    $region57: #{tpu_custom_call.1} parent=1 // pred_fallthru
      _
    // Predicated region
    $region58: #{tpu_custom_call.1} parent=1 // pred_check
      _
    $region59: #{tpu_custom_call.1} parent=1 // pred_check_branch
      %831 = sbr.rel (0) target = $region61
    $region60: #{tpu_custom_call.1} parent=1 // pred_region
      %833 = dma.done [#allocation4], 256
    $region61: #{tpu_custom_call.1} parent=1 // pred_fallthru
      _
    %834 = vsyncpa [#allocation3], 1
    %835 = vsyncpa [#allocation6], 1
    %836 = vsyncpa [#allocation4], 1

</llo_original>
